<compile_context>
chip_gen: v7x
topology: tpu7x:2x2x1
jax: 0.10.0
libtpu: 0.0.40
codegen_flags: <defaults>
</compile_context>

<pallas_src>
import jax
import jax.numpy as jnp
from jax.experimental import pallas as pl
from jax.experimental.pallas import tpu as pltpu


# --------------------------------------------------------------------------
# Kernel
# --------------------------------------------------------------------------
def _wavepool_kernel(x_ref, ms_ref, md_ref, ll_ref, lh_ref, hl_ref, hh_ref):
    # x block : (1, TH, 2, 2*CW) -- row parity on the size-2 dim, a 2*CW-wide
    #           column chunk on the lane axis.
    # ms / md : (2*CW, CW) constant decimation matrices:
    #           ms[2j, j] = ms[2j+1, j] = 1      (pair sum)
    #           md[2j, j] = -1, md[2j+1, j] = 1  (pair difference)
    cd = ms_ref.dtype
    r0 = x_ref[0, :, 0, :].astype(cd)            # even input rows  (TH, 2*CW)
    r1 = x_ref[0, :, 1, :].astype(cd)            # odd  input rows  (TH, 2*CW)

    u = (r0 + r1) * 0.5                          # vertical low-pass   (VPU)
    v = (r1 - r0) * 0.5                          # vertical high-pass  (VPU)

    ms = ms_ref[...]
    md = md_ref[...]
    f32 = jnp.float32
    # Horizontal pair combine on the MXU (free slot for a mem-bound kernel).
    ll_ref[0] = jnp.dot(u, ms, preferred_element_type=f32).astype(ll_ref.dtype)
    lh_ref[0] = jnp.dot(u, md, preferred_element_type=f32).astype(lh_ref.dtype)
    hl_ref[0] = jnp.dot(v, ms, preferred_element_type=f32).astype(hl_ref.dtype)
    hh_ref[0] = jnp.dot(v, md, preferred_element_type=f32).astype(hh_ref.dtype)


# --------------------------------------------------------------------------
# Tiling helpers (all static / trace-time Python)
# --------------------------------------------------------------------------
def _pick_col_chunk(w2):
    # Output block last dim must be a multiple of 128 or the full dim.
    # Prefer 128 output lanes (256 input lanes): full vst, ~1 KiB DMA runs,
    # and the MXU pair-combine stays well under the HBM roofline.
    return 128 if (w2 % 128 == 0) else w2


def _pick_row_tile(h2, cw, itemsize, n_other, vmem_budget):
    """Output rows per grid step (the block's second-minor dim)."""
    if h2 < 8:
        return h2, 1                                     # tiny: one full strip

    sub = {1: 32, 2: 16, 4: 8}.get(itemsize, 8)          # sublane tile height
    in_row = sub * (2 * cw) * itemsize                   # input row-pair block
    #   (parity dim of size 2 is padded to `sub` sublanes in VMEM)
    out_row = 4 * cw * itemsize                          # the four subband rows
    tmp_row = 4 * (2 * cw) * 4 + 4 * cw * 4              # in-kernel f32 temps
    per_row = 2 * (in_row + out_row) + tmp_row           # x2: double buffering
    const = 2 * 2 * (2 * cw) * cw * 4                    # ms/md (f32 bound, x2)

    cap = max(8, (vmem_budget - const) // per_row)

    # v7x megacore: if this is the only grid parallelism, force >= 2 strips.
    if n_other == 1 and h2 >= 16:
        cap = min(cap, (((h2 + 1) // 2) + 7) // 8 * 8)

    if cap >= h2:
        return h2, 1                                     # full dim: always legal

    th = max(8, cap - cap % 8)                           # keep sublane multiple
    # Prefer an exact divisor near the cap (no masked edge block)...
    for cand in range(th, max(8, th // 2) - 1, -8):
        if h2 % cand == 0:
            return cand, h2 // cand
    # ...otherwise cdiv + masked edge block (never shrink to tiny strips).
    return th, -(-h2 // th)


def _decimation_matrices(cw, dtype):
    rows = jnp.arange(2 * cw)[:, None]                   # (2CW, 1)
    cols = jnp.arange(cw)[None, :]                       # (1, CW)
    ms = ((rows // 2) == cols).astype(dtype)             # +1 on both pair rows
    sign = jnp.where(rows % 2 == 0, -1, 1).astype(dtype)
    md = ms * sign                                       # -1 even col, +1 odd
    return ms, md


def _vmem_capacity_bytes():
    try:
        info = pltpu.get_tpu_info()
        return int(getattr(info, "vmem_capacity_bytes", 64 * 1024 * 1024))
    except Exception:
        return 64 * 1024 * 1024                          # conservative (v7x)


# --------------------------------------------------------------------------
# Wrapper
# --------------------------------------------------------------------------
@jax.jit
def wavepool_pallas(x_nchw):
    n, c, h, w = x_nchw.shape
    h2, w2 = h // 2, w // 2
    out4d = (n, c, h2, w2)
    if h2 == 0 or w2 == 0:
        z = jnp.zeros(out4d, x_nchw.dtype)
        return z, z, z, z

    x = x_nchw
    if h != 2 * h2 or w != 2 * w2:
        # VALID stride-2 conv never reads the odd trailing row/col.
        x = x[:, :, :2 * h2, :2 * w2]

    nc = n * c
    # Free reshape (no data movement): expose row parity, keep W on lanes.
    xr = x.reshape(nc, h2, 2, 2 * w2)

    itemsize = jnp.dtype(x_nchw.dtype).itemsize
    cw = _pick_col_chunk(w2)
    ncol = w2 // cw

    # Generation-aware VMEM sizing (v7x: 64 MiB/TC, v5e/v6e: 128 MiB).
    vmem_cap = _vmem_capacity_bytes()
    budget = max(4 * 1024 * 1024, int(vmem_cap * 0.30))
    vmem_limit = min(vmem_cap - 8 * 1024 * 1024, 112 * 1024 * 1024)
    vmem_limit = max(vmem_limit, 32 * 1024 * 1024)

    th, n_row = _pick_row_tile(h2, cw, itemsize, nc * ncol, budget)
    grid = (nc, n_row, ncol)

    compute_dtype = (jnp.bfloat16 if x_nchw.dtype == jnp.bfloat16
                     else jnp.float32)
    ms, md = _decimation_matrices(cw, compute_dtype)

    x_spec = pl.BlockSpec((1, th, 2, 2 * cw), lambda b, i, j: (b, i, 0, j))
    m_spec = pl.BlockSpec((2 * cw, cw), lambda b, i, j: (0, 0))
    o_spec = pl.BlockSpec((1, th, cw), lambda b, i, j: (b, i, j))
    o_sds = jax.ShapeDtypeStruct((nc, h2, w2), x_nchw.dtype)

    in_bytes = nc * h2 * 2 * (2 * w2) * itemsize
    out_bytes = 4 * nc * h2 * w2 * itemsize
    mat_bytes = 2 * (2 * cw) * cw * jnp.dtype(compute_dtype).itemsize
    flops = 16 * nc * h2 * w2 * cw + 12 * nc * h2 * w2   # 4 matmuls + VPU adds

    ll, lh, hl, hh = pl.pallas_call(
        _wavepool_kernel,
        out_shape=(o_sds, o_sds, o_sds, o_sds),
        grid=grid,
        in_specs=[x_spec, m_spec, m_spec],
        out_specs=(o_spec, o_spec, o_spec, o_spec),
        compiler_params=pltpu.CompilerParams(
            dimension_semantics=("parallel", "parallel", "parallel"),
            vmem_limit_bytes=int(vmem_limit)),
        cost_estimate=pl.CostEstimate(
            flops=int(flops),
            transcendentals=0,
            bytes_accessed=int(in_bytes + out_bytes + mat_bytes)),
    )(xr, ms, md)

    rs = lambda y: y.reshape(out4d)                      # free reshape to NCHW
    return rs(ll), rs(lh), rs(hl), rs(hh)


# --------------------------------------------------------------------------
# Pure-JAX reference (exact elementwise math, for checking)
# --------------------------------------------------------------------------
def wavepool_reference(x_nchw):
    n, c, h, w = x_nchw.shape
    h2, w2 = h // 2, w // 2
    x = x_nchw[:, :, :2 * h2, :2 * w2].astype(jnp.float32)
    a = x[:, :, 0::2, 0::2]
    b = x[:, :, 0::2, 1::2]
    cc = x[:, :, 1::2, 0::2]
    d = x[:, :, 1::2, 1::2]
    ll = (a + b + cc + d) * 0.5
    lh = (-a + b - cc + d) * 0.5
    hl = (-a - b + cc + d) * 0.5
    hh = (a - b - cc + d) * 0.5
    return ll, lh, hl, hh


if __name__ == "__main__":
    key = jax.random.PRNGKey(0)
    N, C, H, W = 2, 4, 16, 16
    x = jax.random.normal(key, (N, C, H, W), jnp.float32)

    outs = wavepool_pallas(x)
    jax.block_until_ready(outs)

    refs = wavepool_reference(x)
    for name, o, r in zip(("LL", "LH", "HL", "HH"), outs, refs):
        assert o.shape == (N, C, H // 2, W // 2), (name, o.shape)
        err = float(jnp.max(jnp.abs(o.astype(jnp.float32) - r)))
        assert err < 1e-4, (name, err)
    print("KERNEL_OK")
</pallas_src>

<mosaic_0001>
module attributes {stable_mosaic.version = 11 : i64} {
  func.func @_wavepool_kernel(%arg0: i32, %arg1: i32, %arg2: i32, %arg3: memref<1x8x2x16xf32, #tpu.memory_space<vmem>>, %arg4: memref<16x8xf32, #tpu.memory_space<vmem>>, %arg5: memref<16x8xf32, #tpu.memory_space<vmem>>, %arg6: memref<1x8x8xf32, #tpu.memory_space<vmem>>, %arg7: memref<1x8x8xf32, #tpu.memory_space<vmem>>, %arg8: memref<1x8x8xf32, #tpu.memory_space<vmem>>, %arg9: memref<1x8x8xf32, #tpu.memory_space<vmem>>) attributes {dimension_semantics = [#tpu.dimension_semantics<parallel>, #tpu.dimension_semantics<parallel>, #tpu.dimension_semantics<parallel>], iteration_bounds = array<i64: 8, 1, 1>, scalar_prefetch = 0 : i64, scratch_operands = 0 : i64, tpu.core_type = #tpu.core_type<tc>, window_params = [{transform_indices = @transform_0, window_bounds = array<i64: 1, 8, 2, 16>}, {pipeline_mode = #tpu.pipeline_mode<synchronous>, transform_indices = @transform_1, window_bounds = array<i64: 16, 8>}, {pipeline_mode = #tpu.pipeline_mode<synchronous>, transform_indices = @transform_2, window_bounds = array<i64: 16, 8>}, {transform_indices = @transform_3, window_bounds = array<i64: 1, 8, 8>}, {transform_indices = @transform_4, window_bounds = array<i64: 1, 8, 8>}, {transform_indices = @transform_5, window_bounds = array<i64: 1, 8, 8>}, {transform_indices = @transform_6, window_bounds = array<i64: 1, 8, 8>}]} {
    %c0 = arith.constant 0 : index
    %c0_0 = arith.constant 0 : index
    %c0_1 = arith.constant 0 : index
    %c0_2 = arith.constant 0 : index
    %0 = vector.load %arg3[%c0, %c0_0, %c0_1, %c0_2] : memref<1x8x2x16xf32, #tpu.memory_space<vmem>>, vector<1x8x1x16xf32>
    %1 = vector.shape_cast %0 : vector<1x8x1x16xf32> to vector<8x16xf32>
    %c0_3 = arith.constant 0 : index
    %c0_4 = arith.constant 0 : index
    %c1 = arith.constant 1 : index
    %c0_5 = arith.constant 0 : index
    %2 = vector.load %arg3[%c0_3, %c0_4, %c1, %c0_5] : memref<1x8x2x16xf32, #tpu.memory_space<vmem>>, vector<1x8x1x16xf32>
    %3 = vector.shape_cast %2 : vector<1x8x1x16xf32> to vector<8x16xf32>
    %4 = arith.addf %1, %3 : vector<8x16xf32>
    %cst = arith.constant 5.000000e-01 : f32
    %5 = vector.broadcast %cst : f32 to vector<8x16xf32>
    %6 = arith.mulf %4, %5 : vector<8x16xf32>
    %7 = arith.subf %3, %1 : vector<8x16xf32>
    %cst_6 = arith.constant 5.000000e-01 : f32
    %8 = vector.broadcast %cst_6 : f32 to vector<8x16xf32>
    %9 = arith.mulf %7, %8 : vector<8x16xf32>
    %c0_7 = arith.constant 0 : index
    %c0_8 = arith.constant 0 : index
    %10 = vector.load %arg4[%c0_7, %c0_8] : memref<16x8xf32, #tpu.memory_space<vmem>>, vector<16x8xf32>
    %c0_9 = arith.constant 0 : index
    %c0_10 = arith.constant 0 : index
    %11 = vector.load %arg5[%c0_9, %c0_10] : memref<16x8xf32, #tpu.memory_space<vmem>>, vector<16x8xf32>
    %cst_11 = arith.constant dense<0.000000e+00> : vector<8x8xf32>
    %12 = tpu.matmul %6, %10, %cst_11 {dimension_numbers = #tpu.dot_dimension_numbers<[1], [0], [0], [1], [0, 0, 1, 1], [], []>} : vector<8x16xf32>, vector<16x8xf32>, vector<8x8xf32> -> vector<8x8xf32>
    %c0_12 = arith.constant 0 : index
    %c0_13 = arith.constant 0 : index
    %c0_14 = arith.constant 0 : index
    %13 = vector.load %arg6[%c0_12, %c0_13, %c0_14] : memref<1x8x8xf32, #tpu.memory_space<vmem>>, vector<1x8x8xf32>
    %14 = vector.shape_cast %13 : vector<1x8x8xf32> to vector<8x8xf32>
    %15 = vector.shape_cast %12 : vector<8x8xf32> to vector<1x8x8xf32>
    tpu.vector_store %arg6[%c0_12, %c0_13, %c0_14], %15 {strides = array<i32>} : memref<1x8x8xf32, #tpu.memory_space<vmem>>, vector<1x8x8xf32>,
    %cst_15 = arith.constant dense<0.000000e+00> : vector<8x8xf32>
    %16 = tpu.matmul %6, %11, %cst_15 {dimension_numbers = #tpu.dot_dimension_numbers<[1], [0], [0], [1], [0, 0, 1, 1], [], []>} : vector<8x16xf32>, vector<16x8xf32>, vector<8x8xf32> -> vector<8x8xf32>
    %c0_16 = arith.constant 0 : index
    %c0_17 = arith.constant 0 : index
    %c0_18 = arith.constant 0 : index
    %17 = vector.load %arg7[%c0_16, %c0_17, %c0_18] : memref<1x8x8xf32, #tpu.memory_space<vmem>>, vector<1x8x8xf32>
    %18 = vector.shape_cast %17 : vector<1x8x8xf32> to vector<8x8xf32>
    %19 = vector.shape_cast %16 : vector<8x8xf32> to vector<1x8x8xf32>
    tpu.vector_store %arg7[%c0_16, %c0_17, %c0_18], %19 {strides = array<i32>} : memref<1x8x8xf32, #tpu.memory_space<vmem>>, vector<1x8x8xf32>,
    %cst_19 = arith.constant dense<0.000000e+00> : vector<8x8xf32>
    %20 = tpu.matmul %9, %10, %cst_19 {dimension_numbers = #tpu.dot_dimension_numbers<[1], [0], [0], [1], [0, 0, 1, 1], [], []>} : vector<8x16xf32>, vector<16x8xf32>, vector<8x8xf32> -> vector<8x8xf32>
    %c0_20 = arith.constant 0 : index
    %c0_21 = arith.constant 0 : index
    %c0_22 = arith.constant 0 : index
    %21 = vector.load %arg8[%c0_20, %c0_21, %c0_22] : memref<1x8x8xf32, #tpu.memory_space<vmem>>, vector<1x8x8xf32>
    %22 = vector.shape_cast %21 : vector<1x8x8xf32> to vector<8x8xf32>
    %23 = vector.shape_cast %20 : vector<8x8xf32> to vector<1x8x8xf32>
    tpu.vector_store %arg8[%c0_20, %c0_21, %c0_22], %23 {strides = array<i32>} : memref<1x8x8xf32, #tpu.memory_space<vmem>>, vector<1x8x8xf32>,
    %cst_23 = arith.constant dense<0.000000e+00> : vector<8x8xf32>
    %24 = tpu.matmul %9, %11, %cst_23 {dimension_numbers = #tpu.dot_dimension_numbers<[1], [0], [0], [1], [0, 0, 1, 1], [], []>} : vector<8x16xf32>, vector<16x8xf32>, vector<8x8xf32> -> vector<8x8xf32>
    %c0_24 = arith.constant 0 : index
    %c0_25 = arith.constant 0 : index
    %c0_26 = arith.constant 0 : index
    %25 = vector.load %arg9[%c0_24, %c0_25, %c0_26] : memref<1x8x8xf32, #tpu.memory_space<vmem>>, vector<1x8x8xf32>
    %26 = vector.shape_cast %25 : vector<1x8x8xf32> to vector<8x8xf32>
    %27 = vector.shape_cast %24 : vector<8x8xf32> to vector<1x8x8xf32>
    tpu.vector_store %arg9[%c0_24, %c0_25, %c0_26], %27 {strides = array<i32>} : memref<1x8x8xf32, #tpu.memory_space<vmem>>, vector<1x8x8xf32>,
    return
  }
  func.func @transform_0(%arg0: i32, %arg1: i32, %arg2: i32) -> (i32, i32, i32, i32) {
    %c0_i32 = arith.constant 0 : i32
    %c0_i32_0 = arith.constant 0 : i32
    return %arg0, %arg1, %c0_i32, %arg2 : i32, i32, i32, i32
  }
  func.func @transform_1(%arg0: i32, %arg1: i32, %arg2: i32) -> (i32, i32) {
    %c0_i32 = arith.constant 0 : i32
    %c0_i32_0 = arith.constant 0 : i32
    %c0_i32_1 = arith.constant 0 : i32
    return %c0_i32, %c0_i32_0 : i32, i32
  }
  func.func @transform_2(%arg0: i32, %arg1: i32, %arg2: i32) -> (i32, i32) {
    %c0_i32 = arith.constant 0 : i32
    %c0_i32_0 = arith.constant 0 : i32
    %c0_i32_1 = arith.constant 0 : i32
    return %c0_i32, %c0_i32_0 : i32, i32
  }
  func.func @transform_3(%arg0: i32, %arg1: i32, %arg2: i32) -> (i32, i32, i32) {
    %c0_i32 = arith.constant 0 : i32
    return %arg0, %arg1, %arg2 : i32, i32, i32
  }
  func.func @transform_4(%arg0: i32, %arg1: i32, %arg2: i32) -> (i32, i32, i32) {
    %c0_i32 = arith.constant 0 : i32
    return %arg0, %arg1, %arg2 : i32, i32, i32
  }
  func.func @transform_5(%arg0: i32, %arg1: i32, %arg2: i32) -> (i32, i32, i32) {
    %c0_i32 = arith.constant 0 : i32
    return %arg0, %arg1, %arg2 : i32, i32, i32
  }
  func.func @transform_6(%arg0: i32, %arg1: i32, %arg2: i32) -> (i32, i32, i32) {
    %c0_i32 = arith.constant 0 : i32
    return %arg0, %arg1, %arg2 : i32, i32, i32
  }
}

</mosaic_0001>

<llo_original>
// kernel: wavepool_pallas.1
$region0: #{wavepool_pallas.1}
  #allocation0 [shape = 'u32[]', space=smem, size = 0x4, offset = 0x4, fixed_abs, tag = 'smem constant byte address 0x4 - core index']
  #allocation1 [shape = 'u32[144,128]{1,0:T(1,128)}', space=vmem, size = 0x12000, scoped, tag = 'internal scratch']
  %s0 = inlined_call_operand.hbm [shape: f32[8,8,2,16], index: 0, kind: input, shape index: {}]
  %s1 = inlined_call_operand.vmem [shape: f32[16,8], index: 1, kind: input, shape index: {}]
  %s2 = inlined_call_operand.vmem [shape: f32[16,8], index: 2, kind: input, shape index: {}]
  %s3 = inlined_call_operand.hbm [shape: f32[8,8,8], index: 3, kind: output, shape index: {0}]
  %s4 = inlined_call_operand.hbm [shape: f32[8,8,8], index: 4, kind: output, shape index: {1}]
  %s5 = inlined_call_operand.hbm [shape: f32[8,8,8], index: 5, kind: output, shape index: {2}]
  %s6 = inlined_call_operand.hbm [shape: f32[8,8,8], index: 6, kind: output, shape index: {3}]
  %7 = xla_tuple %s3, %s4, %s5, %s6
  %s8 = sld [smem:[#allocation0]]
  $region73: #{wavepool_pallas.1} parent=0
    _
  %s10 = ssub.s32 1, %s8
  %s11 = scalar_select 0, %s10, %s8
  $region1: #{wavepool_pallas.1} parent=0
    #allocation2 [shape = 'u8[16384]{0}', space=vmem, size = 0x4000, scoped, tag = 'input window, operand 0']
    #allocation3 [shape = 's32[2]{0}', space=sflag, size = 0x8, scoped, tag = 'scoped memory for wavepool_pallas.1']
    #allocation4 [shape = 's32[2]{0}', space=sflag, size = 0x8, scoped, tag = 'scoped memory for wavepool_pallas.1']
    #allocation5 [shape = 'u8[8192]{0}', space=vmem, size = 0x2000, scoped, tag = 'output window, operand 0']
    #allocation6 [shape = 'u8[8192]{0}', space=vmem, size = 0x2000, scoped, tag = 'output window, operand 1']
    #allocation7 [shape = 's32[2]{0}', space=sflag, size = 0x8, scoped, tag = 'scoped memory for wavepool_pallas.1']
    #allocation8 [shape = 'u8[8192]{0}', space=vmem, size = 0x2000, scoped, tag = 'output window, operand 2']
    #allocation9 [shape = 'u8[8192]{0}', space=vmem, size = 0x2000, scoped, tag = 'output window, operand 3']
    #allocation10 [shape = 's32[2]{0}', space=sflag, size = 0x8, scoped, tag = 'scoped memory for wavepool_pallas.1']
    %12 = vsyncpa [#allocation3], 0
    %s13 = scalar_lea.sflag [#allocation3], 1
    %14 = vsyncpa %s13, 0
    %15 = vsyncpa [#allocation4], 0
    %s16 = scalar_lea.sflag [#allocation4], 1
    %17 = vsyncpa %s16, 0
    %18 = vsyncpa [#allocation7], 0
    %s19 = scalar_lea.sflag [#allocation7], 1
    %20 = vsyncpa %s19, 0
    %21 = vsyncpa [#allocation10], 0
    %s22 = scalar_lea.sflag [#allocation10], 1
    %23 = vsyncpa %s22, 0
    loop: start=0, step=1, limit=10
    $region2: #{wavepool_pallas.1} parent=1 // loop_pre_header
      _
    $region3: #{wavepool_pallas.1} parent=1 // loop_header
      %s25 = sphi 0, %s29
      %p26 = scmp.ge.s32.totalorder %s25, 10
      %s32 = sphi 0, %s51
      %s33 = sphi 0, %s47
      %s34 = sphi 0, %s43
      %s35 = sphi 0, %s32
      %s36 = sphi 0, %s33
      %s37 = sphi 0, %s34
      %s38 = sphi 0, %s35
      %s39 = sphi 0, %s36
      %s40 = sphi 0, %s37
      %s58 = sphi 0, %s60
      %s61 = sphi 0, %s58
      %s62 = sphi 0, %s61
      %s78 = sphi 0, %s62
      %s82 = sphi 0, %s82
      %s84 = sphi 0, %s82
      %s85 = sphi 0, %s84
      %s99 = sphi 0, %s85
      %s103 = sphi 0, %s103
      %s105 = sphi 0, %s103
      %s106 = sphi 0, %s105
      %s120 = sphi 0, %s106
      %s130 = sphi 0, %s132
      %s133 = sphi 0, %s130
      %s134 = sphi 0, %s133
      %s150 = sphi 0, %s134
      %s160 = sphi 0, %s162
      %s163 = sphi 0, %s160
      %s164 = sphi 0, %s163
      %s180 = sphi 0, %s164
      %s190 = sphi 0, %s192
      %s193 = sphi 0, %s190
      %s194 = sphi 0, %s193
      %s210 = sphi 0, %s194
      %s220 = sphi 0, %s222
      %s223 = sphi 0, %s220
      %s224 = sphi 0, %s223
      %s240 = sphi 0, %s224
    $region4: #{wavepool_pallas.1} parent=1 // loop_header_branch
      %28 = sbr.rel (%p26) target = $region8
    $region5: #{wavepool_pallas.1} parent=1 // loop_body
      %s30 = ssub.s32 %s25, 1
      %s31 = ssub.s32 %s25, 2
      %s41 = sadd.s32 1, %s34
      %p42 = scmp.ge.s32.totalorder %s41, 1
      %s43 = scalar_select %p42, 0, %s41
      %s44 = sadd.s32 1, %s33
      %s45 = scalar_select %p42, %s44, %s33
      %p46 = scmp.ge.s32.totalorder %s45, 1
      %s47 = scalar_select %p46, 0, %s45
      %s48 = sadd.s32 1, %s32
      %s49 = scalar_select %p46, %s48, %s32
      %p50 = scmp.ge.s32.totalorder %s49, 8
      %s51 = scalar_select %p50, 0, %s49
      %s52 = ssub.s32 %s32, %s51
      %s53 = ssub.s32 %s33, %s47
      %s54 = sor.u32 %s52, %s53
      %s55 = ssub.s32 %s34, %s43
      %s56 = sor.u32 %s54, %s55
      %p57 = scmp.eq.s32.totalorder %s56, 0
      %s59 = sadd.s32 %s58, 1
      %s60 = scalar_select %p57, %s58, %s59
      %p63 = pneg %p57
      %p64 = scmp.eq.s32.totalorder %s25, 7
      %p65 = por %p63, %p64
      %p66 = scmp.ne.s32.totalorder %s58, %s61
      %p67 = scmp.eq.s32.totalorder %s25, 0
      %p68 = por %p66, %p67
      %p69 = scmp.ne.s32.totalorder %s58, %s61
      %p70 = scmp.eq.s32.totalorder %s30, 7
      %p71 = por %p69, %p70
      %p72 = scmp.ne.s32.totalorder %s61, %s62
      %p73 = scmp.eq.s32.totalorder %s30, 0
      %p74 = por %p72, %p73
      %p75 = scmp.ne.s32.totalorder %s61, %s62
      %p76 = scmp.eq.s32.totalorder %s31, 7
      %p77 = por %p75, %p76
      %p79 = scmp.ne.s32.totalorder %s62, %s78
      %p80 = scmp.eq.s32.totalorder %s31, 0
      %p81 = por %p79, %p80
      %s83 = sadd.s32 %s82, 1
      %p86 = scmp.eq.s32.totalorder %s25, 7
      %p87 = scmp.ne.s32.totalorder %s82, %s84
      %p88 = scmp.eq.s32.totalorder %s25, 0
      %p89 = por %p87, %p88
      %p90 = scmp.ne.s32.totalorder %s82, %s84
      %p91 = scmp.eq.s32.totalorder %s30, 7
      %p92 = por %p90, %p91
      %p93 = scmp.ne.s32.totalorder %s84, %s85
      %p94 = scmp.eq.s32.totalorder %s30, 0
      %p95 = por %p93, %p94
      %p96 = scmp.ne.s32.totalorder %s84, %s85
      %p97 = scmp.eq.s32.totalorder %s31, 7
      %p98 = por %p96, %p97
      %p100 = scmp.ne.s32.totalorder %s85, %s99
      %p101 = scmp.eq.s32.totalorder %s31, 0
      %p102 = por %p100, %p101
      %s104 = sadd.s32 %s103, 1
      %p107 = scmp.eq.s32.totalorder %s25, 7
      %p108 = scmp.ne.s32.totalorder %s103, %s105
      %p109 = scmp.eq.s32.totalorder %s25, 0
      %p110 = por %p108, %p109
      %p111 = scmp.ne.s32.totalorder %s103, %s105
      %p112 = scmp.eq.s32.totalorder %s30, 7
      %p113 = por %p111, %p112
      %p114 = scmp.ne.s32.totalorder %s105, %s106
      %p115 = scmp.eq.s32.totalorder %s30, 0
      %p116 = por %p114, %p115
      %p117 = scmp.ne.s32.totalorder %s105, %s106
      %p118 = scmp.eq.s32.totalorder %s31, 7
      %p119 = por %p117, %p118
      %p121 = scmp.ne.s32.totalorder %s106, %s120
      %p122 = scmp.eq.s32.totalorder %s31, 0
      %p123 = por %p121, %p122
      %s124 = ssub.s32 %s32, %s51
      %s125 = ssub.s32 %s33, %s47
      %s126 = sor.u32 %s124, %s125
      %s127 = ssub.s32 %s34, %s43
      %s128 = sor.u32 %s126, %s127
      %p129 = scmp.eq.s32.totalorder %s128, 0
      %s131 = sadd.s32 %s130, 1
      %s132 = scalar_select %p129, %s130, %s131
      %p135 = pneg %p129
      %p136 = scmp.eq.s32.totalorder %s25, 7
      %p137 = por %p135, %p136
      %p138 = scmp.ne.s32.totalorder %s130, %s133
      %p139 = scmp.eq.s32.totalorder %s25, 0
      %p140 = por %p138, %p139
      %p141 = scmp.ne.s32.totalorder %s130, %s133
      %p142 = scmp.eq.s32.totalorder %s30, 7
      %p143 = por %p141, %p142
      %p144 = scmp.ne.s32.totalorder %s133, %s134
      %p145 = scmp.eq.s32.totalorder %s30, 0
      %p146 = por %p144, %p145
      %p147 = scmp.ne.s32.totalorder %s133, %s134
      %p148 = scmp.eq.s32.totalorder %s31, 7
      %p149 = por %p147, %p148
      %p151 = scmp.ne.s32.totalorder %s134, %s150
      %p152 = scmp.eq.s32.totalorder %s31, 0
      %p153 = por %p151, %p152
      %s154 = ssub.s32 %s32, %s51
      %s155 = ssub.s32 %s33, %s47
      %s156 = sor.u32 %s154, %s155
      %s157 = ssub.s32 %s34, %s43
      %s158 = sor.u32 %s156, %s157
      %p159 = scmp.eq.s32.totalorder %s158, 0
      %s161 = sadd.s32 %s160, 1
      %s162 = scalar_select %p159, %s160, %s161
      %p165 = pneg %p159
      %p166 = scmp.eq.s32.totalorder %s25, 7
      %p167 = por %p165, %p166
      %p168 = scmp.ne.s32.totalorder %s160, %s163
      %p169 = scmp.eq.s32.totalorder %s25, 0
      %p170 = por %p168, %p169
      %p171 = scmp.ne.s32.totalorder %s160, %s163
      %p172 = scmp.eq.s32.totalorder %s30, 7
      %p173 = por %p171, %p172
      %p174 = scmp.ne.s32.totalorder %s163, %s164
      %p175 = scmp.eq.s32.totalorder %s30, 0
      %p176 = por %p174, %p175
      %p177 = scmp.ne.s32.totalorder %s163, %s164
      %p178 = scmp.eq.s32.totalorder %s31, 7
      %p179 = por %p177, %p178
      %p181 = scmp.ne.s32.totalorder %s164, %s180
      %p182 = scmp.eq.s32.totalorder %s31, 0
      %p183 = por %p181, %p182
      %s184 = ssub.s32 %s32, %s51
      %s185 = ssub.s32 %s33, %s47
      %s186 = sor.u32 %s184, %s185
      %s187 = ssub.s32 %s34, %s43
      %s188 = sor.u32 %s186, %s187
      %p189 = scmp.eq.s32.totalorder %s188, 0
      %s191 = sadd.s32 %s190, 1
      %s192 = scalar_select %p189, %s190, %s191
      %p195 = pneg %p189
      %p196 = scmp.eq.s32.totalorder %s25, 7
      %p197 = por %p195, %p196
      %p198 = scmp.ne.s32.totalorder %s190, %s193
      %p199 = scmp.eq.s32.totalorder %s25, 0
      %p200 = por %p198, %p199
      %p201 = scmp.ne.s32.totalorder %s190, %s193
      %p202 = scmp.eq.s32.totalorder %s30, 7
      %p203 = por %p201, %p202
      %p204 = scmp.ne.s32.totalorder %s193, %s194
      %p205 = scmp.eq.s32.totalorder %s30, 0
      %p206 = por %p204, %p205
      %p207 = scmp.ne.s32.totalorder %s193, %s194
      %p208 = scmp.eq.s32.totalorder %s31, 7
      %p209 = por %p207, %p208
      %p211 = scmp.ne.s32.totalorder %s194, %s210
      %p212 = scmp.eq.s32.totalorder %s31, 0
      %p213 = por %p211, %p212
      %s214 = ssub.s32 %s32, %s51
      %s215 = ssub.s32 %s33, %s47
      %s216 = sor.u32 %s214, %s215
      %s217 = ssub.s32 %s34, %s43
      %s218 = sor.u32 %s216, %s217
      %p219 = scmp.eq.s32.totalorder %s218, 0
      %s221 = sadd.s32 %s220, 1
      %s222 = scalar_select %p219, %s220, %s221
      %p225 = pneg %p219
      %p226 = scmp.eq.s32.totalorder %s25, 7
      %p227 = por %p225, %p226
      %p228 = scmp.ne.s32.totalorder %s220, %s223
      %p229 = scmp.eq.s32.totalorder %s25, 0
      %p230 = por %p228, %p229
      %p231 = scmp.ne.s32.totalorder %s220, %s223
      %p232 = scmp.eq.s32.totalorder %s30, 7
      %p233 = por %p231, %p232
      %p234 = scmp.ne.s32.totalorder %s223, %s224
      %p235 = scmp.eq.s32.totalorder %s30, 0
      %p236 = por %p234, %p235
      %p237 = scmp.ne.s32.totalorder %s223, %s224
      %p238 = scmp.eq.s32.totalorder %s31, 7
      %p239 = por %p237, %p238
      %p241 = scmp.ne.s32.totalorder %s224, %s240
      %p242 = scmp.eq.s32.totalorder %s31, 0
      %p243 = por %p241, %p242
      %p244 = scmp.le.s32.totalorder 1, %s25
      %p245 = scmp.lt.s32.totalorder %s25, 9
      %p246 = pnand %p244, %p245
      %p247 = pneg %p246
      // Predicated region
      $region9: #{wavepool_pallas.1} parent=5 // pred_check
        _
      $region10: #{wavepool_pallas.1} parent=5 // pred_check_branch
        %249 = sbr.rel (%p246) target = $region12
      $region11: #{wavepool_pallas.1} parent=5 // pred_region
        %s250 = ssub.s32 %s25, 1
        // Predicated region
        $region13: #{wavepool_pallas.1} parent=11 // pred_check
          %p251 = pneg %p95
        $region14: #{wavepool_pallas.1} parent=11 // pred_check_branch
          %253 = sbr.rel (%p251) target = $region16
        $region15: #{wavepool_pallas.1} parent=11 // pred_region
          _
        $region16: #{wavepool_pallas.1} parent=11 // pred_fallthru
          _
        // Predicated region
        $region17: #{wavepool_pallas.1} parent=11 // pred_check
          %p254 = pneg %p116
        $region18: #{wavepool_pallas.1} parent=11 // pred_check_branch
          %256 = sbr.rel (%p254) target = $region20
        $region19: #{wavepool_pallas.1} parent=11 // pred_region
          _
        $region20: #{wavepool_pallas.1} parent=11 // pred_fallthru
          _
      $region12: #{wavepool_pallas.1} parent=5 // pred_fallthru
        _
      %p257 = scmp.lt.s32.totalorder %s25, 8
      // Predicated region
      $region21: #{wavepool_pallas.1} parent=5 // pred_check
        %p258 = pneg %p257
      $region22: #{wavepool_pallas.1} parent=5 // pred_check_branch
        %260 = sbr.rel (%p258) target = $region24
      $region23: #{wavepool_pallas.1} parent=5 // pred_region
        // Predicated region
        $region25: #{wavepool_pallas.1} parent=23 // pred_check
          %p261 = pneg %p68
        $region26: #{wavepool_pallas.1} parent=23 // pred_check_branch
          %263 = sbr.rel (%p261) target = $region28
        $region27: #{wavepool_pallas.1} parent=23 // pred_region
          %s264 = sand.u32 %s58, 1
          %s265 = scalar_lea.sflag [#allocation3], %s264
          %s266 = sand.u32 %s58, 1
          %s267 = smul.addr %s266, 16
          %s268 = scalar_lea.vmem [#allocation2], %s267
          %s269 = smul.u32 8, %s33
          %s271 = ssub.s32 256, 256
          %272 = vsyncadd %s265, %s271
          %s273 = sadd.s32 %s34, %s269
          %s274 = smul.addr %s32, 8
          %s275 = sadd.s32 %s273, %s274
          %s276 = smul.addr %s275, 32
          %s277 = scalar_lea.hbm %s0, %s276
          %s278 = sshll.u32 %s268, 4
          %s279 = int_to_ptr.vmem [resolvable:$true] %s278
          %284 = dma.hbm_to_vmem [thread:$0]  %s277, 256, %s279, %s265, 32, 32, 2
        $region28: #{wavepool_pallas.1} parent=23 // pred_fallthru
          _
      $region24: #{wavepool_pallas.1} parent=5 // pred_fallthru
        _
      %p285 = scmp.le.s32.totalorder 1, %s25
      %p286 = scmp.lt.s32.totalorder %s25, 9
      %p287 = pnand %p285, %p286
      %p288 = pneg %p287
      // Predicated region
      $region29: #{wavepool_pallas.1} parent=5 // pred_check
        _
      $region30: #{wavepool_pallas.1} parent=5 // pred_check_branch
        %290 = sbr.rel (%p287) target = $region32
      $region31: #{wavepool_pallas.1} parent=5 // pred_region
        %s291 = ssub.s32 %s25, 1
        %s292 = sand.u32 %s61, 1
        %s293 = scalar_lea.sflag [#allocation3], %s292
        %s294 = sand.u32 %s61, 1
        %s295 = smul.addr %s294, 16
        %s296 = scalar_lea.vmem [#allocation2], %s295
        // Predicated region
        $region33: #{wavepool_pallas.1} parent=31 // pred_check
          %p297 = pneg %p74
        $region34: #{wavepool_pallas.1} parent=31 // pred_check_branch
          %299 = sbr.rel (%p297) target = $region36
        $region35: #{wavepool_pallas.1} parent=31 // pred_region
          %300 = dma.done %s293, 256
        $region36: #{wavepool_pallas.1} parent=31 // pred_fallthru
          _
        %s301 = sand.u32 %s61, 1
        %s302 = scalar_lea.sflag [#allocation3], %s301
        %s303 = sand.u32 %s61, 1
        %s304 = smul.addr %s303, 16
        %s305 = scalar_lea.vmem [#allocation2], %s304
        %p306 = pneg %p74
        %p307 = pneg %p71
        %p308 = pneg %p95
        %p309 = pneg %p92
        %p310 = pneg %p116
        %p311 = pneg %p113
        %p312 = pneg %p146
        %p313 = pneg %p143
        %s314 = sand.u32 %s133, 1
        %s315 = scalar_lea.sflag [#allocation4], %s314
        %s316 = sand.u32 %s133, 1
        %s317 = smul.addr %s316, 8
        %s318 = scalar_lea.vmem [#allocation5], %s317
        %p319 = pneg %p176
        %p320 = pneg %p173
        %s321 = sand.u32 %s30, 1
        %s322 = scalar_lea.sflag [#allocation7], %s321
        %s323 = sand.u32 %s163, 1
        %s324 = smul.addr %s323, 8
        %s325 = scalar_lea.vmem [#allocation6], %s324
        %p326 = pneg %p206
        %p327 = pneg %p203
        %s328 = sand.u32 %s30, 1
        %s329 = scalar_lea.sflag [#allocation7], %s328
        %s330 = sand.u32 %s193, 1
        %s331 = smul.addr %s330, 8
        %s332 = scalar_lea.vmem [#allocation8], %s331
        %p333 = pneg %p236
        %p334 = pneg %p233
        %s335 = sand.u32 %s223, 1
        %s336 = scalar_lea.sflag [#allocation10], %s335
        %s337 = sand.u32 %s223, 1
        %s338 = smul.addr %s337, 8
        %s339 = scalar_lea.vmem [#allocation9], %s338
        %s340 = smul.u32 8, %s36
        %v341 = vld [vmem:[%s296] sm:$0x1]
        %v342 = vld [vmem:[%s296 + $0x2] sm:$0x1]
        %v343 = vld [vmem:[%s296 + $0x4] sm:$0x1]
        %v344 = vld [vmem:[%s296 + $0x6] sm:$0x1]
        %v345 = vld [vmem:[%s296 + $0x8] sm:$0x1]
        %v346 = vld [vmem:[%s296 + $0xa] sm:$0x1]
        %v347 = vld [vmem:[%s296 + $0xc] sm:$0x1]
        %v348 = vld [vmem:[%s296 + $0xe] sm:$0x1]
        %v349 = vld [vmem:[%s296 + $0x1] sm:$0x1]
        %v350 = vld [vmem:[%s296 + $0x3] sm:$0x1]
        %v351 = vld [vmem:[%s296 + $0x5] sm:$0x1]
        %v352 = vld [vmem:[%s296 + $0x7] sm:$0x1]
        %v353 = vld [vmem:[%s296 + $0x9] sm:$0x1]
        %v354 = vld [vmem:[%s296 + $0xb] sm:$0x1]
        %v355 = vld [vmem:[%s296 + $0xd] sm:$0x1]
        %v356 = vld [vmem:[%s296 + $0xf] sm:$0x1]
        %v357 = vadd.f32 %v341, %v349
        %v358 = vadd.f32 %v342, %v350
        %v359 = vadd.f32 %v343, %v351
        %v360 = vadd.f32 %v344, %v352
        %v361 = vadd.f32 %v345, %v353
        %v362 = vadd.f32 %v346, %v354
        %v363 = vadd.f32 %v347, %v355
        %v364 = vadd.f32 %v348, %v356
        %v365 = vmul.f32 %v357, 0.5
        %v366 = vmul.f32 %v358, 0.5
        %v367 = vmul.f32 %v359, 0.5
        %v368 = vmul.f32 %v360, 0.5
        %v369 = vmul.f32 %v361, 0.5
        %v370 = vmul.f32 %v362, 0.5
        %v371 = vmul.f32 %v363, 0.5
        %v372 = vmul.f32 %v364, 0.5
        %v373 = vsub.f32 %v349, %v341
        %v374 = vsub.f32 %v350, %v342
        %v375 = vsub.f32 %v351, %v343
        %v376 = vsub.f32 %v352, %v344
        %v377 = vsub.f32 %v353, %v345
        %v378 = vsub.f32 %v354, %v346
        %v379 = vsub.f32 %v355, %v347
        %v380 = vsub.f32 %v356, %v348
        %v381 = vmul.f32 %v373, 0.5
        %v382 = vmul.f32 %v374, 0.5
        %v383 = vmul.f32 %v375, 0.5
        %v384 = vmul.f32 %v376, 0.5
        %v385 = vmul.f32 %v377, 0.5
        %v386 = vmul.f32 %v378, 0.5
        %v387 = vmul.f32 %v379, 0.5
        %v388 = vmul.f32 %v380, 0.5
        %v389 = vld [vmem:[%s1] sm:$0xff]
        %v390 = vld [vmem:[%s1 + $0x8] sm:$0xff]
        %v391 = vld [vmem:[%s2] sm:$0xff]
        %v392 = vld [vmem:[%s2 + $0x8] sm:$0xff]
        %v401 = vrot.slane %v366, 7
        %vm402 = vcmask 1041409
        %v403 = vsel %vm402, %v401, %v365
        %v404 = vrot.slane %v367, 6
        %vm405 = vcmask 1042434
        %v406 = vsel %vm405, %v404, %v403
        %v407 = vrot.slane %v368, 5
        %vm408 = vcmask 1043459
        %v409 = vsel %vm408, %v407, %v406
        %v410 = vrot.slane %v369, 4
        %vm411 = vcmask 1044484
        %v412 = vsel %vm411, %v410, %v409
        %v413 = vrot.slane %v370, 3
        %vm414 = vcmask 1045509
        %v415 = vsel %vm414, %v413, %v412
        %v416 = vrot.slane %v371, 2
        %vm417 = vcmask 1046534
        %v418 = vsel %vm417, %v416, %v415
        %v419 = vrot.slane %v372, 1
        %vm420 = vcmask 1047559
        %v421 = vsel %vm420, %v419, %v418
        %vm422 = vcmask 130048
        %v423 = vsel %vm422, %v421, 0
        %425 = vmatprep.subr.mxu0 0.0
        %426 = vmatpush1.msra.mxu0 %v389
        %427 = vmatprep.subr.mxu0 0.0
        %428 = vmatpush1.msra.mxu0 %v390
        %429 = vmatprep.subr.mxu0 0.0
        %430 = vmatpush1.msra.mxu0 0.0
        %431 = vmatprep.subr.mxu0 0.0
        %432 = vmatpush1.msra.mxu0 0.0
        %433 = vmatprep.subr.mxu0 0.0
        %434 = vmatpush1.msra.mxu0 0.0
        %435 = vmatprep.subr.mxu0 0.0
        %436 = vmatpush1.msra.mxu0 0.0
        %437 = vmatprep.subr.mxu0 0.0
        %438 = vmatpush1.msra.mxu0 0.0
        %439 = vmatprep.subr.mxu0 0.0
        %440 = vmatpush1.msra.mxu0 0.0
        %441 = vmatprep.subr.mxu0 0.0
        %442 = vmatpush1.msra.mxu0 0.0
        %443 = vmatprep.subr.mxu0 0.0
        %444 = vmatpush1.msra.mxu0 0.0
        %445 = vmatprep.subr.mxu0 0.0
        %446 = vmatpush1.msra.mxu0 0.0
        %447 = vmatprep.subr.mxu0 0.0
        %448 = vmatpush1.msra.mxu0 0.0
        %449 = vmatprep.subr.mxu0 0.0
        %450 = vmatpush1.msra.mxu0 0.0
        %451 = vmatprep.subr.mxu0 0.0
        %452 = vmatpush1.msra.mxu0 0.0
        %453 = vmatprep.subr.mxu0 0.0
        %454 = vmatpush1.msra.mxu0 0.0
        %455 = vmatprep.subr.mxu0 0.0
        %456 = vmatpush1.msra.mxu0 0.0
        %457 = vmatprep.subr.mxu0 0.0
        %458 = vmatpush1.msra.mxu0 0.0
        %459 = vmatprep.subr.mxu0 0.0
        %460 = vmatpush1.msra.mxu0 0.0
        %461 = vmatprep.subr.mxu0 0.0
        %462 = vmatpush1.msra.mxu0 0.0
        %463 = vmatprep.subr.mxu0 0.0
        %464 = vmatpush1.msra.mxu0 0.0
        %465 = vmatprep.subr.mxu0 0.0
        %466 = vmatpush1.msra.mxu0 0.0
        %467 = vmatprep.subr.mxu0 0.0
        %468 = vmatpush1.msra.mxu0 0.0
        %469 = vmatprep.subr.mxu0 0.0
        %470 = vmatpush1.msra.mxu0 0.0
        %471 = vmatprep.subr.mxu0 0.0
        %472 = vmatpush1.msra.mxu0 0.0
        %473 = vmatprep.subr.mxu0 0.0
        %474 = vmatpush1.msra.mxu0 0.0
        %475 = vmatprep.subr.mxu0 0.0
        %476 = vmatpush1.msra.mxu0 0.0
        %477 = vmatprep.subr.mxu0 0.0
        %478 = vmatpush1.msra.mxu0 0.0
        %479 = vmatprep.subr.mxu0 0.0
        %480 = vmatpush1.msra.mxu0 0.0
        %481 = vmatprep.subr.mxu0 0.0
        %482 = vmatpush1.msra.mxu0 0.0
        %483 = vmatprep.subr.mxu0 0.0
        %484 = vmatpush1.msra.mxu0 0.0
        %485 = vmatprep.subr.mxu0 0.0
        %486 = vmatpush1.msra.mxu0 0.0
        %487 = vmatprep.subr.mxu0 0.0
        %488 = vmatpush1.msra.mxu0 0.0
        %489 = vmatprep.mubr.f32.mxu0 0.0
        %490 = vmatmul.mubr.f32.gmra.mrb[0].mxu0 %v423
        %v491 = vpop.f32.mrb[0].mxu0
        %v492 = vadd.f32 0.0, %v491
        %v493 = vpop.f32.mrb[0].mxu0
        %494 = vdwg.mxu0
        %vm495 = vcmask 64512
        %496 = vst.msk [vmem:[%s318] sm:$0xff] %vm495, %v492
        %497 = vmatprep.subr.mxu0 0.0
        %498 = vmatpush1.msra.mxu0 %v391
        %499 = vmatprep.subr.mxu0 0.0
        %500 = vmatpush1.msra.mxu0 %v392
        %501 = vmatprep.subr.mxu0 0.0
        %502 = vmatpush1.msra.mxu0 0.0
        %503 = vmatprep.subr.mxu0 0.0
        %504 = vmatpush1.msra.mxu0 0.0
        %505 = vmatprep.subr.mxu0 0.0
        %506 = vmatpush1.msra.mxu0 0.0
        %507 = vmatprep.subr.mxu0 0.0
        %508 = vmatpush1.msra.mxu0 0.0
        %509 = vmatprep.subr.mxu0 0.0
        %510 = vmatpush1.msra.mxu0 0.0
        %511 = vmatprep.subr.mxu0 0.0
        %512 = vmatpush1.msra.mxu0 0.0
        %513 = vmatprep.subr.mxu0 0.0
        %514 = vmatpush1.msra.mxu0 0.0
        %515 = vmatprep.subr.mxu0 0.0
        %516 = vmatpush1.msra.mxu0 0.0
        %517 = vmatprep.subr.mxu0 0.0
        %518 = vmatpush1.msra.mxu0 0.0
        %519 = vmatprep.subr.mxu0 0.0
        %520 = vmatpush1.msra.mxu0 0.0
        %521 = vmatprep.subr.mxu0 0.0
        %522 = vmatpush1.msra.mxu0 0.0
        %523 = vmatprep.subr.mxu0 0.0
        %524 = vmatpush1.msra.mxu0 0.0
        %525 = vmatprep.subr.mxu0 0.0
        %526 = vmatpush1.msra.mxu0 0.0
        %527 = vmatprep.subr.mxu0 0.0
        %528 = vmatpush1.msra.mxu0 0.0
        %529 = vmatprep.subr.mxu0 0.0
        %530 = vmatpush1.msra.mxu0 0.0
        %531 = vmatprep.subr.mxu0 0.0
        %532 = vmatpush1.msra.mxu0 0.0
        %533 = vmatprep.subr.mxu0 0.0
        %534 = vmatpush1.msra.mxu0 0.0
        %535 = vmatprep.subr.mxu0 0.0
        %536 = vmatpush1.msra.mxu0 0.0
        %537 = vmatprep.subr.mxu0 0.0
        %538 = vmatpush1.msra.mxu0 0.0
        %539 = vmatprep.subr.mxu0 0.0
        %540 = vmatpush1.msra.mxu0 0.0
        %541 = vmatprep.subr.mxu0 0.0
        %542 = vmatpush1.msra.mxu0 0.0
        %543 = vmatprep.subr.mxu0 0.0
        %544 = vmatpush1.msra.mxu0 0.0
        %545 = vmatprep.subr.mxu0 0.0
        %546 = vmatpush1.msra.mxu0 0.0
        %547 = vmatprep.subr.mxu0 0.0
        %548 = vmatpush1.msra.mxu0 0.0
        %549 = vmatprep.subr.mxu0 0.0
        %550 = vmatpush1.msra.mxu0 0.0
        %551 = vmatprep.subr.mxu0 0.0
        %552 = vmatpush1.msra.mxu0 0.0
        %553 = vmatprep.subr.mxu0 0.0
        %554 = vmatpush1.msra.mxu0 0.0
        %555 = vmatprep.subr.mxu0 0.0
        %556 = vmatpush1.msra.mxu0 0.0
        %557 = vmatprep.subr.mxu0 0.0
        %558 = vmatpush1.msra.mxu0 0.0
        %559 = vmatprep.subr.mxu0 0.0
        %560 = vmatpush1.msra.mxu0 0.0
        %561 = vmatprep.mubr.f32.mxu0 0.0
        %562 = vmatmul.mubr.f32.gmra.mrb[0].mxu0 %v423
        %v563 = vpop.f32.mrb[0].mxu0
        %v564 = vadd.f32 0.0, %v563
        %v565 = vpop.f32.mrb[0].mxu0
        %566 = vdwg.mxu0
        %567 = vst.msk [vmem:[%s325] sm:$0xff] %vm495, %v564
        %v576 = vrot.slane %v382, 7
        %v577 = vsel %vm402, %v576, %v381
        %v578 = vrot.slane %v383, 6
        %v579 = vsel %vm405, %v578, %v577
        %v580 = vrot.slane %v384, 5
        %v581 = vsel %vm408, %v580, %v579
        %v582 = vrot.slane %v385, 4
        %v583 = vsel %vm411, %v582, %v581
        %v584 = vrot.slane %v386, 3
        %v585 = vsel %vm414, %v584, %v583
        %v586 = vrot.slane %v387, 2
        %v587 = vsel %vm417, %v586, %v585
        %v588 = vrot.slane %v388, 1
        %v589 = vsel %vm420, %v588, %v587
        %v590 = vsel %vm422, %v589, 0
        %592 = vmatprep.subr.mxu0 0.0
        %593 = vmatpush1.msra.mxu0 %v389
        %594 = vmatprep.subr.mxu0 0.0
        %595 = vmatpush1.msra.mxu0 %v390
        %596 = vmatprep.subr.mxu0 0.0
        %597 = vmatpush1.msra.mxu0 0.0
        %598 = vmatprep.subr.mxu0 0.0
        %599 = vmatpush1.msra.mxu0 0.0
        %600 = vmatprep.subr.mxu0 0.0
        %601 = vmatpush1.msra.mxu0 0.0
        %602 = vmatprep.subr.mxu0 0.0
        %603 = vmatpush1.msra.mxu0 0.0
        %604 = vmatprep.subr.mxu0 0.0
        %605 = vmatpush1.msra.mxu0 0.0
        %606 = vmatprep.subr.mxu0 0.0
        %607 = vmatpush1.msra.mxu0 0.0
        %608 = vmatprep.subr.mxu0 0.0
        %609 = vmatpush1.msra.mxu0 0.0
        %610 = vmatprep.subr.mxu0 0.0
        %611 = vmatpush1.msra.mxu0 0.0
        %612 = vmatprep.subr.mxu0 0.0
        %613 = vmatpush1.msra.mxu0 0.0
        %614 = vmatprep.subr.mxu0 0.0
        %615 = vmatpush1.msra.mxu0 0.0
        %616 = vmatprep.subr.mxu0 0.0
        %617 = vmatpush1.msra.mxu0 0.0
        %618 = vmatprep.subr.mxu0 0.0
        %619 = vmatpush1.msra.mxu0 0.0
        %620 = vmatprep.subr.mxu0 0.0
        %621 = vmatpush1.msra.mxu0 0.0
        %622 = vmatprep.subr.mxu0 0.0
        %623 = vmatpush1.msra.mxu0 0.0
        %624 = vmatprep.subr.mxu0 0.0
        %625 = vmatpush1.msra.mxu0 0.0
        %626 = vmatprep.subr.mxu0 0.0
        %627 = vmatpush1.msra.mxu0 0.0
        %628 = vmatprep.subr.mxu0 0.0
        %629 = vmatpush1.msra.mxu0 0.0
        %630 = vmatprep.subr.mxu0 0.0
        %631 = vmatpush1.msra.mxu0 0.0
        %632 = vmatprep.subr.mxu0 0.0
        %633 = vmatpush1.msra.mxu0 0.0
        %634 = vmatprep.subr.mxu0 0.0
        %635 = vmatpush1.msra.mxu0 0.0
        %636 = vmatprep.subr.mxu0 0.0
        %637 = vmatpush1.msra.mxu0 0.0
        %638 = vmatprep.subr.mxu0 0.0
        %639 = vmatpush1.msra.mxu0 0.0
        %640 = vmatprep.subr.mxu0 0.0
        %641 = vmatpush1.msra.mxu0 0.0
        %642 = vmatprep.subr.mxu0 0.0
        %643 = vmatpush1.msra.mxu0 0.0
        %644 = vmatprep.subr.mxu0 0.0
        %645 = vmatpush1.msra.mxu0 0.0
        %646 = vmatprep.subr.mxu0 0.0
        %647 = vmatpush1.msra.mxu0 0.0
        %648 = vmatprep.subr.mxu0 0.0
        %649 = vmatpush1.msra.mxu0 0.0
        %650 = vmatprep.subr.mxu0 0.0
        %651 = vmatpush1.msra.mxu0 0.0
        %652 = vmatprep.subr.mxu0 0.0
        %653 = vmatpush1.msra.mxu0 0.0
        %654 = vmatprep.subr.mxu0 0.0
        %655 = vmatpush1.msra.mxu0 0.0
        %656 = vmatprep.mubr.f32.mxu0 0.0
        %657 = vmatmul.mubr.f32.gmra.mrb[0].mxu0 %v590
        %v658 = vpop.f32.mrb[0].mxu0
        %v659 = vadd.f32 0.0, %v658
        %v660 = vpop.f32.mrb[0].mxu0
        %661 = vdwg.mxu0
        %662 = vst.msk [vmem:[%s332] sm:$0xff] %vm495, %v659
        %663 = vmatprep.subr.mxu0 0.0
        %664 = vmatpush1.msra.mxu0 %v391
        %665 = vmatprep.subr.mxu0 0.0
        %666 = vmatpush1.msra.mxu0 %v392
        %667 = vmatprep.subr.mxu0 0.0
        %668 = vmatpush1.msra.mxu0 0.0
        %669 = vmatprep.subr.mxu0 0.0
        %670 = vmatpush1.msra.mxu0 0.0
        %671 = vmatprep.subr.mxu0 0.0
        %672 = vmatpush1.msra.mxu0 0.0
        %673 = vmatprep.subr.mxu0 0.0
        %674 = vmatpush1.msra.mxu0 0.0
        %675 = vmatprep.subr.mxu0 0.0
        %676 = vmatpush1.msra.mxu0 0.0
        %677 = vmatprep.subr.mxu0 0.0
        %678 = vmatpush1.msra.mxu0 0.0
        %679 = vmatprep.subr.mxu0 0.0
        %680 = vmatpush1.msra.mxu0 0.0
        %681 = vmatprep.subr.mxu0 0.0
        %682 = vmatpush1.msra.mxu0 0.0
        %683 = vmatprep.subr.mxu0 0.0
        %684 = vmatpush1.msra.mxu0 0.0
        %685 = vmatprep.subr.mxu0 0.0
        %686 = vmatpush1.msra.mxu0 0.0
        %687 = vmatprep.subr.mxu0 0.0
        %688 = vmatpush1.msra.mxu0 0.0
        %689 = vmatprep.subr.mxu0 0.0
        %690 = vmatpush1.msra.mxu0 0.0
        %691 = vmatprep.subr.mxu0 0.0
        %692 = vmatpush1.msra.mxu0 0.0
        %693 = vmatprep.subr.mxu0 0.0
        %694 = vmatpush1.msra.mxu0 0.0
        %695 = vmatprep.subr.mxu0 0.0
        %696 = vmatpush1.msra.mxu0 0.0
        %697 = vmatprep.subr.mxu0 0.0
        %698 = vmatpush1.msra.mxu0 0.0
        %699 = vmatprep.subr.mxu0 0.0
        %700 = vmatpush1.msra.mxu0 0.0
        %701 = vmatprep.subr.mxu0 0.0
        %702 = vmatpush1.msra.mxu0 0.0
        %703 = vmatprep.subr.mxu0 0.0
        %704 = vmatpush1.msra.mxu0 0.0
        %705 = vmatprep.subr.mxu0 0.0
        %706 = vmatpush1.msra.mxu0 0.0
        %707 = vmatprep.subr.mxu0 0.0
        %708 = vmatpush1.msra.mxu0 0.0
        %709 = vmatprep.subr.mxu0 0.0
        %710 = vmatpush1.msra.mxu0 0.0
        %711 = vmatprep.subr.mxu0 0.0
        %712 = vmatpush1.msra.mxu0 0.0
        %713 = vmatprep.subr.mxu0 0.0
        %714 = vmatpush1.msra.mxu0 0.0
        %715 = vmatprep.subr.mxu0 0.0
        %716 = vmatpush1.msra.mxu0 0.0
        %717 = vmatprep.subr.mxu0 0.0
        %718 = vmatpush1.msra.mxu0 0.0
        %719 = vmatprep.subr.mxu0 0.0
        %720 = vmatpush1.msra.mxu0 0.0
        %721 = vmatprep.subr.mxu0 0.0
        %722 = vmatpush1.msra.mxu0 0.0
        %723 = vmatprep.subr.mxu0 0.0
        %724 = vmatpush1.msra.mxu0 0.0
        %725 = vmatprep.subr.mxu0 0.0
        %726 = vmatpush1.msra.mxu0 0.0
        %727 = vmatprep.mubr.f32.mxu0 0.0
        %728 = vmatmul.mubr.f32.gmra.mrb[0].mxu0 %v590
        %v729 = vpop.f32.mrb[0].mxu0
        %v730 = vadd.f32 0.0, %v729
        %v731 = vpop.f32.mrb[0].mxu0
        %732 = vdwg.mxu0
        %733 = vst.msk [vmem:[%s339] sm:$0xff] %vm495, %v730
        %s734 = sand.u32 %s133, 1
        %s735 = scalar_lea.sflag [#allocation4], %s734
        %s736 = sand.u32 %s133, 1
        %s737 = smul.addr %s736, 8
        %s738 = scalar_lea.vmem [#allocation5], %s737
        %s739 = sand.u32 %s30, 1
        %s740 = scalar_lea.sflag [#allocation7], %s739
        %s741 = sand.u32 %s163, 1
        %s742 = smul.addr %s741, 8
        %s743 = scalar_lea.vmem [#allocation6], %s742
        %s744 = sand.u32 %s30, 1
        %s745 = scalar_lea.sflag [#allocation7], %s744
        %s746 = sand.u32 %s193, 1
        %s747 = smul.addr %s746, 8
        %s748 = scalar_lea.vmem [#allocation8], %s747
        %s749 = sand.u32 %s223, 1
        %s750 = scalar_lea.sflag [#allocation10], %s749
        %s751 = sand.u32 %s223, 1
        %s752 = smul.addr %s751, 8
        %s753 = scalar_lea.vmem [#allocation9], %s752
        // Predicated region
        $region37: #{wavepool_pallas.1} parent=31 // pred_check
          %p754 = pneg %p143
        $region38: #{wavepool_pallas.1} parent=31 // pred_check_branch
          %756 = sbr.rel (%p754) target = $region40
        $region39: #{wavepool_pallas.1} parent=31 // pred_region
          %s758 = ssub.s32 128, 128
          %759 = vsyncadd %s735, %s758
          %s760 = sadd.s32 %s37, %s36
          %s761 = sadd.s32 %s760, %s35
          %s762 = smul.addr %s761, 128
          %s763 = scalar_lea.hbm %s3, %s762
          %s765 = sshll.u32 %s738, 4
          %s766 = int_to_ptr.vmem [resolvable:$true] %s765
          %768 = dma.vmem_to_hbm [thread:$0]  %s766, 128, %s763, %s735
        $region40: #{wavepool_pallas.1} parent=31 // pred_fallthru
          _
        // Predicated region
        $region41: #{wavepool_pallas.1} parent=31 // pred_check
          %p769 = pneg %p173
        $region42: #{wavepool_pallas.1} parent=31 // pred_check_branch
          %771 = sbr.rel (%p769) target = $region44
        $region43: #{wavepool_pallas.1} parent=31 // pred_region
          %s773 = ssub.s32 128, 128
          %774 = vsyncadd %s740, %s773
          %s775 = sadd.s32 %s37, %s36
          %s776 = sadd.s32 %s775, %s35
          %s777 = smul.addr %s776, 128
          %s778 = scalar_lea.hbm %s4, %s777
          %s780 = sshll.u32 %s743, 4
          %s781 = int_to_ptr.vmem [resolvable:$true] %s780
          %783 = dma.vmem_to_hbm [thread:$0]  %s781, 128, %s778, %s740
        $region44: #{wavepool_pallas.1} parent=31 // pred_fallthru
          _
        // Predicated region
        $region45: #{wavepool_pallas.1} parent=31 // pred_check
          %p784 = pneg %p203
        $region46: #{wavepool_pallas.1} parent=31 // pred_check_branch
          %786 = sbr.rel (%p784) target = $region48
        $region47: #{wavepool_pallas.1} parent=31 // pred_region
          %s788 = ssub.s32 128, 128
          %789 = vsyncadd %s745, %s788
          %s790 = sadd.s32 %s37, %s36
          %s791 = sadd.s32 %s790, %s35
          %s792 = smul.addr %s791, 128
          %s793 = scalar_lea.hbm %s5, %s792
          %s795 = sshll.u32 %s748, 4
          %s796 = int_to_ptr.vmem [resolvable:$true] %s795
          %798 = dma.vmem_to_hbm [thread:$0]  %s796, 128, %s793, %s745
        $region48: #{wavepool_pallas.1} parent=31 // pred_fallthru
          _
        // Predicated region
        $region49: #{wavepool_pallas.1} parent=31 // pred_check
          %p799 = pneg %p233
        $region50: #{wavepool_pallas.1} parent=31 // pred_check_branch
          %801 = sbr.rel (%p799) target = $region52
        $region51: #{wavepool_pallas.1} parent=31 // pred_region
          %s803 = ssub.s32 128, 128
          %804 = vsyncadd %s750, %s803
          %s805 = sadd.s32 %s37, %s36
          %s806 = sadd.s32 %s805, %s35
          %s807 = smul.addr %s806, 128
          %s808 = scalar_lea.hbm %s6, %s807
          %s810 = sshll.u32 %s753, 4
          %s811 = int_to_ptr.vmem [resolvable:$true] %s810
          %813 = dma.vmem_to_hbm [thread:$0]  %s811, 128, %s808, %s750
        $region52: #{wavepool_pallas.1} parent=31 // pred_fallthru
          _
      $region32: #{wavepool_pallas.1} parent=5 // pred_fallthru
        _
      %p814 = scmp.le.s32.totalorder 2, %s25
      // Predicated region
      $region53: #{wavepool_pallas.1} parent=5 // pred_check
        %p815 = pneg %p814
      $region54: #{wavepool_pallas.1} parent=5 // pred_check_branch
        %817 = sbr.rel (%p815) target = $region56
      $region55: #{wavepool_pallas.1} parent=5 // pred_region
        %s818 = ssub.s32 %s25, 2
        // Predicated region
        $region57: #{wavepool_pallas.1} parent=55 // pred_check
          %p819 = pneg %p149
        $region58: #{wavepool_pallas.1} parent=55 // pred_check_branch
          %821 = sbr.rel (%p819) target = $region60
        $region59: #{wavepool_pallas.1} parent=55 // pred_region
          %s822 = sand.u32 %s134, 1
          %s823 = scalar_lea.sflag [#allocation4], %s822
          %s824 = sand.u32 %s134, 1
          %s825 = smul.addr %s824, 8
          %s826 = scalar_lea.vmem [#allocation5], %s825
          %827 = dma.done %s823, 128
        $region60: #{wavepool_pallas.1} parent=55 // pred_fallthru
          _
        // Predicated region
        $region61: #{wavepool_pallas.1} parent=55 // pred_check
          %p828 = pneg %p179
        $region62: #{wavepool_pallas.1} parent=55 // pred_check_branch
          %830 = sbr.rel (%p828) target = $region64
        $region63: #{wavepool_pallas.1} parent=55 // pred_region
          %s831 = sand.u32 %s31, 1
          %s832 = scalar_lea.sflag [#allocation7], %s831
          %s833 = sand.u32 %s164, 1
          %s834 = smul.addr %s833, 8
          %s835 = scalar_lea.vmem [#allocation6], %s834
          %836 = dma.done %s832, 128
        $region64: #{wavepool_pallas.1} parent=55 // pred_fallthru
          _
        // Predicated region
        $region65: #{wavepool_pallas.1} parent=55 // pred_check
          %p837 = pneg %p209
        $region66: #{wavepool_pallas.1} parent=55 // pred_check_branch
          %839 = sbr.rel (%p837) target = $region68
        $region67: #{wavepool_pallas.1} parent=55 // pred_region
          %s840 = sand.u32 %s31, 1
          %s841 = scalar_lea.sflag [#allocation7], %s840
          %s842 = sand.u32 %s194, 1
          %s843 = smul.addr %s842, 8
          %s844 = scalar_lea.vmem [#allocation8], %s843
          %845 = dma.done %s841, 128
        $region68: #{wavepool_pallas.1} parent=55 // pred_fallthru
          _
        // Predicated region
        $region69: #{wavepool_pallas.1} parent=55 // pred_check
          %p846 = pneg %p239
        $region70: #{wavepool_pallas.1} parent=55 // pred_check_branch
          %848 = sbr.rel (%p846) target = $region72
        $region71: #{wavepool_pallas.1} parent=55 // pred_region
          %s849 = sand.u32 %s224, 1
          %s850 = scalar_lea.sflag [#allocation10], %s849
          %s851 = sand.u32 %s224, 1
          %s852 = smul.addr %s851, 8
          %s853 = scalar_lea.vmem [#allocation9], %s852
          %854 = dma.done %s850, 128
        $region72: #{wavepool_pallas.1} parent=55 // pred_fallthru
          _
      $region56: #{wavepool_pallas.1} parent=5 // pred_fallthru
        _
    $region6: #{wavepool_pallas.1} parent=1 // loop_footer
      %s29 = sadd.s32 1, %s25
    $region7: #{wavepool_pallas.1} parent=1 // loop_footer_branch
      %24 = sbr.rel target = $region3
    $region8: #{wavepool_pallas.1} parent=1 // loop_exit
      _
    %855 = vsyncpa [#allocation3], 1
    %s856 = scalar_lea.sflag [#allocation3], 1
    %857 = vsyncpa %s856, 1
    %858 = vsyncpa [#allocation4], 1
    %s859 = scalar_lea.sflag [#allocation4], 1
    %860 = vsyncpa %s859, 1
    %861 = vsyncpa [#allocation7], 1
    %s862 = scalar_lea.sflag [#allocation7], 1
    %863 = vsyncpa %s862, 1
    %864 = vsyncpa [#allocation10], 1
    %s865 = scalar_lea.sflag [#allocation10], 1
    %866 = vsyncpa %s865, 1

</llo_original>
